<compile_context>
chip_gen: v6e
topology: v6e:2x2x1
jax: 0.10.0
libtpu: 0.0.40
codegen_flags: <defaults>
</compile_context>

<pallas_src>
import functools

import jax
import jax.numpy as jnp
from jax import lax
from jax.experimental import pallas as pl
from jax.experimental.pallas import tpu as pltpu


def _round_up(a, b):
    return (a + b - 1) // b * b


def _gap_kernel(x_ref, o_ref, acc_ref, *, inv_hw, hw_rem, precision):
    """Row-sum of a (TILE_NC, TILE_HW) block, accumulated over the HW grid axis.

    x_ref : (TILE_NC, TILE_HW) VMEM block in the *native* input dtype (no
            upcast; the MXU takes bf16/f32 directly with f32 accumulation).
    o_ref : (1, TILE_NC) lane-dense output slab (written on the last HW step).
    acc_ref: (1, TILE_NC) f32 scratch accumulator (resident across HW steps).
    """
    j = pl.program_id(1)
    nhw = pl.num_programs(1)

    @pl.when(j == 0)
    def _init():
        acc_ref[...] = jnp.zeros_like(acc_ref)

    def _accumulate(cols):
        # ones-vector contraction on the MXU: (1, cols) . (TILE_NC, cols)^T
        # -> (1, TILE_NC), directly lane-major for a lane-dense output store.
        x = x_ref[...] if cols == x_ref.shape[1] else x_ref[:, :cols]
        ones = jnp.ones((1, cols), dtype=x_ref.dtype)
        acc_ref[...] += lax.dot_general(
            ones, x, (((1,), (1,)), ((), ())),
            preferred_element_type=jnp.float32, precision=precision)

    if hw_rem:
        # HW does not divide evenly: the last HW block is ragged. Contract only
        # its valid columns (zero-multiplying garbage columns is not NaN-safe,
        # and they would otherwise pollute every row's sum).
        @pl.when(j < nhw - 1)
        def _full():
            _accumulate(x_ref.shape[1])

        @pl.when(j == nhw - 1)
        def _ragged():
            _accumulate(hw_rem)
    else:
        _accumulate(x_ref.shape[1])

    @pl.when(j == nhw - 1)
    def _finalize():
        # 1/HW scaling once per row-tile on the tiny (1, TILE_NC) f32 result,
        # then cast to the output dtype.
        o_ref[...] = (acc_ref[...] * inv_hw).astype(o_ref.dtype)


def _default_target_block_bytes():
    # Size the per-step input block from physical VMEM: ~1/8 of capacity keeps
    # the double-buffered footprint (+ headroom) comfortably resident on every
    # generation (v7x 64 MiB -> 8 MiB blocks; v5e/v6e 128 MiB -> 12 MiB cap).
    try:
        vmem = int(pltpu.get_tpu_info().vmem_capacity_bytes)
        return int(min(12 << 20, max(4 << 20, vmem // 8)))
    except Exception:
        return 8 << 20


def _choose_tiles(nc, hw, itemsize, target_bytes):
    """Pick (tile_nc, tile_hw) for the flattened (NC, HW) view."""
    # Reduction / lane axis: keep the whole row (single reduction step) unless a
    # minimum-height block would blow the budget (large spatial, e.g. 224x224).
    min_rows = nc if nc <= 128 else 128
    if hw <= 128 or hw * min_rows * itemsize <= target_bytes:
        tile_hw = hw
    else:
        tile_hw = max(128, (target_bytes // (min_rows * itemsize)) // 128 * 128)
        if tile_hw >= hw:
            tile_hw = hw

    # Row axis.
    if nc <= 128:
        tile_nc = nc            # block dims == full array dims (no padding)
    else:
        # Multiple of 128 so the (1, TILE_NC) output slab is lane-dense and the
        # input block satisfies the (8, 128) constraint for every dtype.
        budget_rows = max(128, (target_bytes // (tile_hw * itemsize)) // 128 * 128)
        # Cap at ~half the rows so the "parallel" axis has >= 2 steps and both
        # TensorCores of a v7x chip get work even when one block would fit all.
        half_rows = max(128, _round_up(pl.cdiv(nc, 2), 128))
        tile_nc = min(budget_rows, half_rows)
    return tile_nc, tile_hw


def global_avg_pool2d(x, *, target_block_bytes=None):
    """Pallas GlobalAvgPool2d: (N, C, H, W) -> (N, C), same dtype as input."""
    N, C, H, W = x.shape
    NC, HW = N * C, H * W
    itemsize = x.dtype.itemsize
    if target_block_bytes is None:
        target_block_bytes = _default_target_block_bytes()

    # Free view of contiguous NCHW memory: the reduction axis becomes the lane
    # axis.  No jnp.pad anywhere; ragged last blocks are handled by the grid.
    x2 = x.reshape(NC, HW)

    tile_nc, tile_hw = _choose_tiles(NC, HW, itemsize, target_block_bytes)
    grid = (pl.cdiv(NC, tile_nc), pl.cdiv(HW, tile_hw))
    hw_rem = HW % tile_hw if tile_hw < HW else 0

    cp_kwargs = {"dimension_semantics": ("parallel", "arbitrary")}
    block_bytes = tile_nc * tile_hw * itemsize
    # Double-buffered input block + f32 accumulator + output slab + headroom.
    # (No hidden f32 upcast intermediate anymore: the kernel feeds native dtype.)
    vmem_need = 2 * block_bytes + 4 * _round_up(tile_nc, 128) * 8 + (2 << 20)
    if vmem_need > (16 << 20):   # only raise above the smallest scoped default
        cp_kwargs["vmem_limit_bytes"] = int(vmem_need)

    kernel = functools.partial(
        _gap_kernel,
        inv_hw=1.0 / float(HW),
        hw_rem=hw_rem,
        precision=lax.Precision.HIGHEST)

    out = pl.pallas_call(
        kernel,
        out_shape=jax.ShapeDtypeStruct((1, NC), x.dtype),
        grid=grid,
        in_specs=[pl.BlockSpec((tile_nc, tile_hw), lambda i, j: (i, j))],
        out_specs=pl.BlockSpec((1, tile_nc), lambda i, j: (0, i)),
        scratch_shapes=[pltpu.VMEM((1, tile_nc), jnp.float32)],
        compiler_params=pltpu.CompilerParams(**cp_kwargs),
    )(x2)
    return out.reshape(N, C)


def _check(x, atol, rtol, **kw):
    out = jax.block_until_ready(global_avg_pool2d(x, **kw))
    ref = jnp.mean(x.astype(jnp.float32), axis=(2, 3)).astype(x.dtype)
    assert out.shape == (x.shape[0], x.shape[1]), out.shape
    assert out.dtype == x.dtype, out.dtype
    assert jnp.allclose(out.astype(jnp.float32), ref.astype(jnp.float32),
                        atol=atol, rtol=rtol), "mismatch vs reference"


if __name__ == "__main__":
    key = jax.random.PRNGKey(0)
    k0, k1, k2, k3 = jax.random.split(key, 4)

    # Primary small NCHW input consistent with the module's forward pass.
    x = jax.random.normal(k0, (2, 4, 16, 16), dtype=jnp.float32)
    _check(x, atol=1e-5, rtol=1e-5)

    # Multi-row-tile path with a ragged last NC block (no jnp.pad): NC = 400
    # rows split across 256-row tiles; OOB rows/lanes are simply discarded.
    x_rag = jax.random.normal(k1, (2, 200, 16, 16), dtype=jnp.float32)
    _check(x_rag, atol=1e-5, rtol=1e-5)

    # 2-D grid path: HW split across the "arbitrary" reduction axis with an f32
    # accumulator, including a ragged (partial-column) last HW block (HW = 400).
    x_hw = jax.random.normal(k2, (2, 256, 20, 20), dtype=jnp.float32)
    _check(x_hw, atol=1e-5, rtol=1e-5, target_block_bytes=64 * 1024)

    # bf16: native-dtype MXU feed (no f32 upcast) + NC not a sublane multiple.
    x_bf16 = jax.random.normal(k3, (2, 3, 16, 16), dtype=jnp.bfloat16)
    _check(x_bf16, atol=1e-2, rtol=1e-2)

    print("KERNEL_OK")
</pallas_src>

<mosaic_0001>
module attributes {stable_mosaic.version = 11 : i64} {
  func.func @_gap_kernel(%arg0: i32, %arg1: i32, %arg2: memref<8x256xf32, #tpu.memory_space<vmem>>, %arg3: memref<1x8xf32, #tpu.memory_space<vmem>>, %arg4: memref<1x8xf32, #tpu.memory_space<vmem>>) attributes {dimension_semantics = [#tpu.dimension_semantics<parallel>, #tpu.dimension_semantics<arbitrary>], iteration_bounds = array<i64: 1, 1>, scalar_prefetch = 0 : i64, scratch_operands = 1 : i64, tpu.core_type = #tpu.core_type<tc>, window_params = [{transform_indices = @transform_0, window_bounds = array<i64: 8, 256>}, {transform_indices = @transform_1, window_bounds = array<i64: 1, 8>}]} {
    %c0_i32 = arith.constant 0 : i32
    %0 = arith.cmpi eq, %arg1, %c0_i32 : i32
    %1 = arith.extui %0 : i1 to i32
    %c0_i32_0 = arith.constant 0 : i32
    %2 = arith.cmpi ne, %1, %c0_i32_0 : i32
    scf.if %2 {
      %cst_9 = arith.constant 0.000000e+00 : f32
      %12 = vector.broadcast %cst_9 : f32 to vector<1x8xf32>
      %c0_10 = arith.constant 0 : index
      %c0_11 = arith.constant 0 : index
      %13 = vector.load %arg4[%c0_10, %c0_11] : memref<1x8xf32, #tpu.memory_space<vmem>>, vector<1x8xf32>
      tpu.vector_store %arg4[%c0_10, %c0_11], %12 {strides = array<i32>} : memref<1x8xf32, #tpu.memory_space<vmem>>, vector<1x8xf32>,
    } else {
    }
    %c0 = arith.constant 0 : index
    %c0_1 = arith.constant 0 : index
    %3 = vector.load %arg2[%c0, %c0_1] : memref<8x256xf32, #tpu.memory_space<vmem>>, vector<8x256xf32>
    %cst = arith.constant 1.000000e+00 : f32
    %4 = vector.broadcast %cst : f32 to vector<1x256xf32>
    %c0_2 = arith.constant 0 : index
    %c0_3 = arith.constant 0 : index
    %5 = vector.load %arg4[%c0_2, %c0_3] : memref<1x8xf32, #tpu.memory_space<vmem>>, vector<1x8xf32>
    %cst_4 = arith.constant dense<0.000000e+00> : vector<1x8xf32>
    %6 = tpu.matmul %4, %3, %cst_4 {dimension_numbers = #tpu.dot_dimension_numbers<[1], [1], [0], [0], [0, 0, 1, 0], [], []>, precision = #tpu.contract_precision<fp32>} : vector<1x256xf32>, vector<8x256xf32>, vector<1x8xf32> -> vector<1x8xf32>
    %7 = arith.addf %5, %6 : vector<1x8xf32>
    %c0_5 = arith.constant 0 : index
    %c0_6 = arith.constant 0 : index
    %8 = vector.load %arg4[%c0_5, %c0_6] : memref<1x8xf32, #tpu.memory_space<vmem>>, vector<1x8xf32>
    tpu.vector_store %arg4[%c0_5, %c0_6], %7 {strides = array<i32>} : memref<1x8xf32, #tpu.memory_space<vmem>>, vector<1x8xf32>,
    %c0_i32_7 = arith.constant 0 : i32
    %9 = arith.cmpi eq, %arg1, %c0_i32_7 : i32
    %10 = arith.extui %9 : i1 to i32
    %c0_i32_8 = arith.constant 0 : i32
    %11 = arith.cmpi ne, %10, %c0_i32_8 : i32
    scf.if %11 {
      %c0_9 = arith.constant 0 : index
      %c0_10 = arith.constant 0 : index
      %12 = vector.load %arg4[%c0_9, %c0_10] : memref<1x8xf32, #tpu.memory_space<vmem>>, vector<1x8xf32>
      %cst_11 = arith.constant 3.906250e-03 : f32
      %13 = vector.broadcast %cst_11 : f32 to vector<1x8xf32>
      %14 = arith.mulf %12, %13 : vector<1x8xf32>
      %c0_12 = arith.constant 0 : index
      %c0_13 = arith.constant 0 : index
      %15 = vector.load %arg3[%c0_12, %c0_13] : memref<1x8xf32, #tpu.memory_space<vmem>>, vector<1x8xf32>
      tpu.vector_store %arg3[%c0_12, %c0_13], %14 {strides = array<i32>} : memref<1x8xf32, #tpu.memory_space<vmem>>, vector<1x8xf32>,
    } else {
    }
    return
  }
  func.func @transform_0(%arg0: i32, %arg1: i32) -> (i32, i32) {
    %c0_i32 = arith.constant 0 : i32
    return %arg0, %arg1 : i32, i32
  }
  func.func @transform_1(%arg0: i32, %arg1: i32) -> (i32, i32) {
    %c0_i32 = arith.constant 0 : i32
    %c0_i32_0 = arith.constant 0 : i32
    return %c0_i32, %arg0 : i32, i32
  }
}

</mosaic_0001>

<llo_original>
// kernel: tpu_custom_call.1
$region0: #{tpu_custom_call.1}
  #allocation0 [shape = 'u32[]', space=smem, size = 0x4, offset = 0x4, fixed_abs, tag = 'smem constant byte address 0x4 - core index']
  #allocation1 [shape = 'u32[144,128]{1,0:T(1,128)}', space=vmem, size = 0x12000, scoped, tag = 'internal scratch']
  #allocation2 [shape = 'f32[1,8]{1,0:T(1,128)}', space=vmem, size = 0x200, scoped, tag = 'scratch operand']
  %s0 = inlined_call_operand.hbm [shape: f32[8,256], index: 0, kind: input, shape index: {}]
  %s1 = inlined_call_operand.hbm [shape: f32[1,8], index: 1, kind: output, shape index: {}]
  %s2 = sld [smem:[#allocation0]]
  $region26: #{tpu_custom_call.1} parent=0
    _
  %s4 = ssub.s32 1, %s2
  %s5 = scalar_select 0, %s4, %s2
  $region1: #{tpu_custom_call.1} parent=0
    #allocation3 [shape = 'u8[8192]{0}', space=vmem, size = 0x2000, scoped, tag = 'input window, operand 0, single buffered']
    #allocation4 [shape = 's32[1]{0}', space=sflag, size = 0x4, scoped, tag = 'scoped memory for tpu_custom_call.1']
    #allocation5 [shape = 's32[1]{0}', space=sflag, size = 0x4, scoped, tag = 'scoped memory for tpu_custom_call.1']
    #allocation6 [shape = 'u8[512]{0}', space=vmem, size = 0x400, scoped, tag = 'output window, operand 0, single buffered']
    %6 = vsyncpa [#allocation4], 0
    %7 = vsyncpa [#allocation5], 0
    // Predicated region
    $region2: #{tpu_custom_call.1} parent=1 // pred_check
      _
    $region3: #{tpu_custom_call.1} parent=1 // pred_check_branch
      %9 = sbr.rel (0) target = $region5
    $region4: #{tpu_custom_call.1} parent=1 // pred_region
      %s11 = ssub.s32 256, 256
      %12 = vsyncadd [#allocation4], %s11
      %s14 = sshll.u32 [#allocation3], 4
      %s15 = int_to_ptr.vmem [resolvable:$true] %s14
      %17 = dma.hbm_to_vmem [thread:$0]  %s0, 256, %s15, [#allocation4]
    $region5: #{tpu_custom_call.1} parent=1 // pred_fallthru
      _
    // Predicated region
    $region6: #{tpu_custom_call.1} parent=1 // pred_check
      _
    $region7: #{tpu_custom_call.1} parent=1 // pred_check_branch
      %19 = sbr.rel (0) target = $region9
    $region8: #{tpu_custom_call.1} parent=1 // pred_region
      %20 = dma.done [#allocation4], 256
    $region9: #{tpu_custom_call.1} parent=1 // pred_fallthru
      _
    %p21 = scmp.eq.s32.totalorder 0, 0
    // Predicated region
    $region10: #{tpu_custom_call.1} parent=1 // pred_check
      %p22 = pneg %p21
    $region11: #{tpu_custom_call.1} parent=1 // pred_check_branch
      %24 = sbr.rel (%p22) target = $region13
    $region12: #{tpu_custom_call.1} parent=1 // pred_region
      %vm25 = vcmask 57344
      %26 = vst.msk [vmem:[#allocation2] sm:$0x1] %vm25, 0.0
    $region13: #{tpu_custom_call.1} parent=1 // pred_fallthru
      _
    %v27 = vld [vmem:[#allocation3] sm:$0xff]
    %v28 = vld [vmem:[#allocation3 + $0x8] sm:$0xff]
    %v29 = vld [vmem:[#allocation2] sm:$0x1]
    %30 = vmatprep.subr.mxu0 0.0
    %31 = vmatpush1.xpose.msra.mxu0 0.0
    %32 = vmatprep.subr.mxu0 0.0
    %33 = vmatpush1.xpose.msra.mxu0 0.0
    %34 = vmatprep.subr.mxu0 0.0
    %35 = vmatpush1.xpose.msra.mxu0 0.0
    %36 = vmatprep.subr.mxu0 0.0
    %37 = vmatpush1.xpose.msra.mxu0 0.0
    %38 = vmatprep.subr.mxu0 0.0
    %39 = vmatpush1.xpose.msra.mxu0 0.0
    %40 = vmatprep.subr.mxu0 0.0
    %41 = vmatpush1.xpose.msra.mxu0 0.0
    %42 = vmatprep.subr.mxu0 0.0
    %43 = vmatpush1.xpose.msra.mxu0 0.0
    %44 = vmatprep.subr.mxu0 0.0
    %45 = vmatpush1.xpose.msra.mxu0 0.0
    %46 = vmatprep.subr.mxu0 0.0
    %47 = vmatpush1.xpose.msra.mxu0 0.0
    %48 = vmatprep.subr.mxu0 0.0
    %49 = vmatpush1.xpose.msra.mxu0 0.0
    %50 = vmatprep.subr.mxu0 0.0
    %51 = vmatpush1.xpose.msra.mxu0 0.0
    %52 = vmatprep.subr.mxu0 0.0
    %53 = vmatpush1.xpose.msra.mxu0 0.0
    %54 = vmatprep.subr.mxu0 0.0
    %55 = vmatpush1.xpose.msra.mxu0 0.0
    %56 = vmatprep.subr.mxu0 0.0
    %57 = vmatpush1.xpose.msra.mxu0 0.0
    %58 = vmatprep.subr.mxu0 0.0
    %59 = vmatpush1.xpose.msra.mxu0 0.0
    %v60 = vand.u32 %v28, 4294901760
    %61 = vmatprep.subr.mxu0 %v60
    %v62 = vand.u32 %v27, 4294901760
    %63 = vmatpush1.xpose.msra.mxu0 %v62
    %64 = vmatprep.subr.mxu0 0.0
    %65 = vmatpush2.xpose.msra.mxu0 0.0
    %66 = vmatprep.subr.mxu0 0.0
    %67 = vmatpush2.xpose.msra.mxu0 0.0
    %68 = vmatprep.subr.mxu0 0.0
    %69 = vmatpush2.xpose.msra.mxu0 0.0
    %70 = vmatprep.subr.mxu0 0.0
    %71 = vmatpush2.xpose.msra.mxu0 0.0
    %72 = vmatprep.subr.mxu0 0.0
    %73 = vmatpush2.xpose.msra.mxu0 0.0
    %74 = vmatprep.subr.mxu0 0.0
    %75 = vmatpush2.xpose.msra.mxu0 0.0
    %76 = vmatprep.subr.mxu0 0.0
    %77 = vmatpush2.xpose.msra.mxu0 0.0
    %78 = vmatprep.subr.mxu0 0.0
    %79 = vmatpush2.xpose.msra.mxu0 0.0
    %80 = vmatprep.subr.mxu0 0.0
    %81 = vmatpush2.xpose.msra.mxu0 0.0
    %82 = vmatprep.subr.mxu0 0.0
    %83 = vmatpush2.xpose.msra.mxu0 0.0
    %84 = vmatprep.subr.mxu0 0.0
    %85 = vmatpush2.xpose.msra.mxu0 0.0
    %86 = vmatprep.subr.mxu0 0.0
    %87 = vmatpush2.xpose.msra.mxu0 0.0
    %88 = vmatprep.subr.mxu0 0.0
    %89 = vmatpush2.xpose.msra.mxu0 0.0
    %90 = vmatprep.subr.mxu0 0.0
    %91 = vmatpush2.xpose.msra.mxu0 0.0
    %92 = vmatprep.subr.mxu0 0.0
    %93 = vmatpush2.xpose.msra.mxu0 0.0
    %94 = vmatprep.subr.mxu0 0.0
    %95 = vmatpush2.xpose.msra.mxu0 0.0
    %96 = vmatprep.mubr.f32.mxu0 0.0
    %97 = vmatmul.mubr.f32.gmra.mxu0 0.0
    %v98 = vpop.f32.mrf.mxu0
    %v99 = vadd.f32 0.0, %v98
    %v100 = vpop.f32.mrf.mxu0
    %101 = vdwg.mxu0
    %102 = vmatprep.subr.mxu0 0.0
    %103 = vmatpush1.xpose.msra.mxu0 0.0
    %104 = vmatprep.subr.mxu0 0.0
    %105 = vmatpush1.xpose.msra.mxu0 0.0
    %106 = vmatprep.subr.mxu0 0.0
    %107 = vmatpush1.xpose.msra.mxu0 0.0
    %108 = vmatprep.subr.mxu0 0.0
    %109 = vmatpush1.xpose.msra.mxu0 0.0
    %110 = vmatprep.subr.mxu0 0.0
    %111 = vmatpush1.xpose.msra.mxu0 0.0
    %112 = vmatprep.subr.mxu0 0.0
    %113 = vmatpush1.xpose.msra.mxu0 0.0
    %114 = vmatprep.subr.mxu0 0.0
    %115 = vmatpush1.xpose.msra.mxu0 0.0
    %116 = vmatprep.subr.mxu0 0.0
    %117 = vmatpush1.xpose.msra.mxu0 0.0
    %118 = vmatprep.subr.mxu0 0.0
    %119 = vmatpush1.xpose.msra.mxu0 0.0
    %120 = vmatprep.subr.mxu0 0.0
    %121 = vmatpush1.xpose.msra.mxu0 0.0
    %122 = vmatprep.subr.mxu0 0.0
    %123 = vmatpush1.xpose.msra.mxu0 0.0
    %124 = vmatprep.subr.mxu0 0.0
    %125 = vmatpush1.xpose.msra.mxu0 0.0
    %126 = vmatprep.subr.mxu0 0.0
    %127 = vmatpush1.xpose.msra.mxu0 0.0
    %128 = vmatprep.subr.mxu0 0.0
    %129 = vmatpush1.xpose.msra.mxu0 0.0
    %130 = vmatprep.subr.mxu0 0.0
    %131 = vmatpush1.xpose.msra.mxu0 0.0
    %v132 = vand.u32 %v28, 4294901760
    %v133 = vsub.f32 %v28, %v132
    %v134 = vand.u32 %v133, 4294901760
    %v135 = vsub.f32 %v133, %v134
    %v136 = vand.u32 %v135, 4294901760
    %137 = vmatprep.subr.mxu0 %v136
    %v138 = vand.u32 %v27, 4294901760
    %v139 = vsub.f32 %v27, %v138
    %v140 = vand.u32 %v139, 4294901760
    %v141 = vsub.f32 %v139, %v140
    %v142 = vand.u32 %v141, 4294901760
    %143 = vmatpush1.xpose.msra.mxu0 %v142
    %144 = vmatprep.subr.mxu0 0.0
    %145 = vmatpush2.xpose.msra.mxu0 0.0
    %146 = vmatprep.subr.mxu0 0.0
    %147 = vmatpush2.xpose.msra.mxu0 0.0
    %148 = vmatprep.subr.mxu0 0.0
    %149 = vmatpush2.xpose.msra.mxu0 0.0
    %150 = vmatprep.subr.mxu0 0.0
    %151 = vmatpush2.xpose.msra.mxu0 0.0
    %152 = vmatprep.subr.mxu0 0.0
    %153 = vmatpush2.xpose.msra.mxu0 0.0
    %154 = vmatprep.subr.mxu0 0.0
    %155 = vmatpush2.xpose.msra.mxu0 0.0
    %156 = vmatprep.subr.mxu0 0.0
    %157 = vmatpush2.xpose.msra.mxu0 0.0
    %158 = vmatprep.subr.mxu0 0.0
    %159 = vmatpush2.xpose.msra.mxu0 0.0
    %160 = vmatprep.subr.mxu0 0.0
    %161 = vmatpush2.xpose.msra.mxu0 0.0
    %162 = vmatprep.subr.mxu0 0.0
    %163 = vmatpush2.xpose.msra.mxu0 0.0
    %164 = vmatprep.subr.mxu0 0.0
    %165 = vmatpush2.xpose.msra.mxu0 0.0
    %166 = vmatprep.subr.mxu0 0.0
    %167 = vmatpush2.xpose.msra.mxu0 0.0
    %168 = vmatprep.subr.mxu0 0.0
    %169 = vmatpush2.xpose.msra.mxu0 0.0
    %170 = vmatprep.subr.mxu0 0.0
    %171 = vmatpush2.xpose.msra.mxu0 0.0
    %172 = vmatprep.subr.mxu0 0.0
    %173 = vmatpush2.xpose.msra.mxu0 0.0
    %174 = vmatprep.subr.mxu0 0.0
    %175 = vmatpush2.xpose.msra.mxu0 0.0
    %176 = vmatprep.mubr.f32.mxu0 1.0
    %177 = vmatmul.mubr.f32.gmra.mxu0 1.0
    %v178 = vpop.f32.mrf.mxu0
    %v179 = vadd.f32 %v99, %v178
    %v180 = vpop.f32.mrf.mxu0
    %181 = vdwg.mxu0
    %182 = vmatprep.subr.mxu0 0.0
    %183 = vmatpush1.xpose.msra.mxu0 0.0
    %184 = vmatprep.subr.mxu0 0.0
    %185 = vmatpush1.xpose.msra.mxu0 0.0
    %186 = vmatprep.subr.mxu0 0.0
    %187 = vmatpush1.xpose.msra.mxu0 0.0
    %188 = vmatprep.subr.mxu0 0.0
    %189 = vmatpush1.xpose.msra.mxu0 0.0
    %190 = vmatprep.subr.mxu0 0.0
    %191 = vmatpush1.xpose.msra.mxu0 0.0
    %192 = vmatprep.subr.mxu0 0.0
    %193 = vmatpush1.xpose.msra.mxu0 0.0
    %194 = vmatprep.subr.mxu0 0.0
    %195 = vmatpush1.xpose.msra.mxu0 0.0
    %196 = vmatprep.subr.mxu0 0.0
    %197 = vmatpush1.xpose.msra.mxu0 0.0
    %198 = vmatprep.subr.mxu0 0.0
    %199 = vmatpush1.xpose.msra.mxu0 0.0
    %200 = vmatprep.subr.mxu0 0.0
    %201 = vmatpush1.xpose.msra.mxu0 0.0
    %202 = vmatprep.subr.mxu0 0.0
    %203 = vmatpush1.xpose.msra.mxu0 0.0
    %204 = vmatprep.subr.mxu0 0.0
    %205 = vmatpush1.xpose.msra.mxu0 0.0
    %206 = vmatprep.subr.mxu0 0.0
    %207 = vmatpush1.xpose.msra.mxu0 0.0
    %208 = vmatprep.subr.mxu0 0.0
    %209 = vmatpush1.xpose.msra.mxu0 0.0
    %210 = vmatprep.subr.mxu0 0.0
    %211 = vmatpush1.xpose.msra.mxu0 0.0
    %v212 = vand.u32 %v28, 4294901760
    %v213 = vsub.f32 %v28, %v212
    %214 = vmatprep.subr.mxu0 %v213
    %v215 = vand.u32 %v27, 4294901760
    %v216 = vsub.f32 %v27, %v215
    %217 = vmatpush1.xpose.msra.mxu0 %v216
    %218 = vmatprep.subr.mxu0 0.0
    %219 = vmatpush2.xpose.msra.mxu0 0.0
    %220 = vmatprep.subr.mxu0 0.0
    %221 = vmatpush2.xpose.msra.mxu0 0.0
    %222 = vmatprep.subr.mxu0 0.0
    %223 = vmatpush2.xpose.msra.mxu0 0.0
    %224 = vmatprep.subr.mxu0 0.0
    %225 = vmatpush2.xpose.msra.mxu0 0.0
    %226 = vmatprep.subr.mxu0 0.0
    %227 = vmatpush2.xpose.msra.mxu0 0.0
    %228 = vmatprep.subr.mxu0 0.0
    %229 = vmatpush2.xpose.msra.mxu0 0.0
    %230 = vmatprep.subr.mxu0 0.0
    %231 = vmatpush2.xpose.msra.mxu0 0.0
    %232 = vmatprep.subr.mxu0 0.0
    %233 = vmatpush2.xpose.msra.mxu0 0.0
    %234 = vmatprep.subr.mxu0 0.0
    %235 = vmatpush2.xpose.msra.mxu0 0.0
    %236 = vmatprep.subr.mxu0 0.0
    %237 = vmatpush2.xpose.msra.mxu0 0.0
    %238 = vmatprep.subr.mxu0 0.0
    %239 = vmatpush2.xpose.msra.mxu0 0.0
    %240 = vmatprep.subr.mxu0 0.0
    %241 = vmatpush2.xpose.msra.mxu0 0.0
    %242 = vmatprep.subr.mxu0 0.0
    %243 = vmatpush2.xpose.msra.mxu0 0.0
    %244 = vmatprep.subr.mxu0 0.0
    %245 = vmatpush2.xpose.msra.mxu0 0.0
    %246 = vmatprep.subr.mxu0 0.0
    %247 = vmatpush2.xpose.msra.mxu0 0.0
    %248 = vmatprep.subr.mxu0 0.0
    %249 = vmatpush2.xpose.msra.mxu0 0.0
    %250 = vmatprep.mubr.f32.mxu0 0.0
    %251 = vmatmul.mubr.f32.gmra.mxu0 0.0
    %v252 = vpop.f32.mrf.mxu0
    %v253 = vadd.f32 %v179, %v252
    %v254 = vpop.f32.mrf.mxu0
    %255 = vdwg.mxu0
    %256 = vmatprep.subr.mxu0 0.0
    %257 = vmatpush1.xpose.msra.mxu0 0.0
    %258 = vmatprep.subr.mxu0 0.0
    %259 = vmatpush1.xpose.msra.mxu0 0.0
    %260 = vmatprep.subr.mxu0 0.0
    %261 = vmatpush1.xpose.msra.mxu0 0.0
    %262 = vmatprep.subr.mxu0 0.0
    %263 = vmatpush1.xpose.msra.mxu0 0.0
    %264 = vmatprep.subr.mxu0 0.0
    %265 = vmatpush1.xpose.msra.mxu0 0.0
    %266 = vmatprep.subr.mxu0 0.0
    %267 = vmatpush1.xpose.msra.mxu0 0.0
    %268 = vmatprep.subr.mxu0 0.0
    %269 = vmatpush1.xpose.msra.mxu0 0.0
    %270 = vmatprep.subr.mxu0 0.0
    %271 = vmatpush1.xpose.msra.mxu0 0.0
    %272 = vmatprep.subr.mxu0 0.0
    %273 = vmatpush1.xpose.msra.mxu0 0.0
    %274 = vmatprep.subr.mxu0 0.0
    %275 = vmatpush1.xpose.msra.mxu0 0.0
    %276 = vmatprep.subr.mxu0 0.0
    %277 = vmatpush1.xpose.msra.mxu0 0.0
    %278 = vmatprep.subr.mxu0 0.0
    %279 = vmatpush1.xpose.msra.mxu0 0.0
    %280 = vmatprep.subr.mxu0 0.0
    %281 = vmatpush1.xpose.msra.mxu0 0.0
    %282 = vmatprep.subr.mxu0 0.0
    %283 = vmatpush1.xpose.msra.mxu0 0.0
    %284 = vmatprep.subr.mxu0 0.0
    %285 = vmatpush1.xpose.msra.mxu0 0.0
    %v286 = vand.u32 %v28, 4294901760
    %287 = vmatprep.subr.mxu0 %v286
    %v288 = vand.u32 %v27, 4294901760
    %289 = vmatpush1.xpose.msra.mxu0 %v288
    %290 = vmatprep.subr.mxu0 0.0
    %291 = vmatpush2.xpose.msra.mxu0 0.0
    %292 = vmatprep.subr.mxu0 0.0
    %293 = vmatpush2.xpose.msra.mxu0 0.0
    %294 = vmatprep.subr.mxu0 0.0
    %295 = vmatpush2.xpose.msra.mxu0 0.0
    %296 = vmatprep.subr.mxu0 0.0
    %297 = vmatpush2.xpose.msra.mxu0 0.0
    %298 = vmatprep.subr.mxu0 0.0
    %299 = vmatpush2.xpose.msra.mxu0 0.0
    %300 = vmatprep.subr.mxu0 0.0
    %301 = vmatpush2.xpose.msra.mxu0 0.0
    %302 = vmatprep.subr.mxu0 0.0
    %303 = vmatpush2.xpose.msra.mxu0 0.0
    %304 = vmatprep.subr.mxu0 0.0
    %305 = vmatpush2.xpose.msra.mxu0 0.0
    %306 = vmatprep.subr.mxu0 0.0
    %307 = vmatpush2.xpose.msra.mxu0 0.0
    %308 = vmatprep.subr.mxu0 0.0
    %309 = vmatpush2.xpose.msra.mxu0 0.0
    %310 = vmatprep.subr.mxu0 0.0
    %311 = vmatpush2.xpose.msra.mxu0 0.0
    %312 = vmatprep.subr.mxu0 0.0
    %313 = vmatpush2.xpose.msra.mxu0 0.0
    %314 = vmatprep.subr.mxu0 0.0
    %315 = vmatpush2.xpose.msra.mxu0 0.0
    %316 = vmatprep.subr.mxu0 0.0
    %317 = vmatpush2.xpose.msra.mxu0 0.0
    %318 = vmatprep.subr.mxu0 0.0
    %319 = vmatpush2.xpose.msra.mxu0 0.0
    %320 = vmatprep.subr.mxu0 0.0
    %321 = vmatpush2.xpose.msra.mxu0 0.0
    %322 = vmatprep.mubr.f32.mxu0 0.0
    %323 = vmatmul.mubr.f32.gmra.mxu0 0.0
    %v324 = vpop.f32.mrf.mxu0
    %v325 = vadd.f32 %v253, %v324
    %v326 = vpop.f32.mrf.mxu0
    %327 = vdwg.mxu0
    %328 = vmatprep.subr.mxu0 0.0
    %329 = vmatpush1.xpose.msra.mxu0 0.0
    %330 = vmatprep.subr.mxu0 0.0
    %331 = vmatpush1.xpose.msra.mxu0 0.0
    %332 = vmatprep.subr.mxu0 0.0
    %333 = vmatpush1.xpose.msra.mxu0 0.0
    %334 = vmatprep.subr.mxu0 0.0
    %335 = vmatpush1.xpose.msra.mxu0 0.0
    %336 = vmatprep.subr.mxu0 0.0
    %337 = vmatpush1.xpose.msra.mxu0 0.0
    %338 = vmatprep.subr.mxu0 0.0
    %339 = vmatpush1.xpose.msra.mxu0 0.0
    %340 = vmatprep.subr.mxu0 0.0
    %341 = vmatpush1.xpose.msra.mxu0 0.0
    %342 = vmatprep.subr.mxu0 0.0
    %343 = vmatpush1.xpose.msra.mxu0 0.0
    %344 = vmatprep.subr.mxu0 0.0
    %345 = vmatpush1.xpose.msra.mxu0 0.0
    %346 = vmatprep.subr.mxu0 0.0
    %347 = vmatpush1.xpose.msra.mxu0 0.0
    %348 = vmatprep.subr.mxu0 0.0
    %349 = vmatpush1.xpose.msra.mxu0 0.0
    %350 = vmatprep.subr.mxu0 0.0
    %351 = vmatpush1.xpose.msra.mxu0 0.0
    %352 = vmatprep.subr.mxu0 0.0
    %353 = vmatpush1.xpose.msra.mxu0 0.0
    %354 = vmatprep.subr.mxu0 0.0
    %355 = vmatpush1.xpose.msra.mxu0 0.0
    %356 = vmatprep.subr.mxu0 0.0
    %357 = vmatpush1.xpose.msra.mxu0 0.0
    %v358 = vand.u32 %v28, 4294901760
    %v359 = vsub.f32 %v28, %v358
    %v360 = vand.u32 %v359, 4294901760
    %361 = vmatprep.subr.mxu0 %v360
    %v362 = vand.u32 %v27, 4294901760
    %v363 = vsub.f32 %v27, %v362
    %v364 = vand.u32 %v363, 4294901760
    %365 = vmatpush1.xpose.msra.mxu0 %v364
    %366 = vmatprep.subr.mxu0 0.0
    %367 = vmatpush2.xpose.msra.mxu0 0.0
    %368 = vmatprep.subr.mxu0 0.0
    %369 = vmatpush2.xpose.msra.mxu0 0.0
    %370 = vmatprep.subr.mxu0 0.0
    %371 = vmatpush2.xpose.msra.mxu0 0.0
    %372 = vmatprep.subr.mxu0 0.0
    %373 = vmatpush2.xpose.msra.mxu0 0.0
    %374 = vmatprep.subr.mxu0 0.0
    %375 = vmatpush2.xpose.msra.mxu0 0.0
    %376 = vmatprep.subr.mxu0 0.0
    %377 = vmatpush2.xpose.msra.mxu0 0.0
    %378 = vmatprep.subr.mxu0 0.0
    %379 = vmatpush2.xpose.msra.mxu0 0.0
    %380 = vmatprep.subr.mxu0 0.0
    %381 = vmatpush2.xpose.msra.mxu0 0.0
    %382 = vmatprep.subr.mxu0 0.0
    %383 = vmatpush2.xpose.msra.mxu0 0.0
    %384 = vmatprep.subr.mxu0 0.0
    %385 = vmatpush2.xpose.msra.mxu0 0.0
    %386 = vmatprep.subr.mxu0 0.0
    %387 = vmatpush2.xpose.msra.mxu0 0.0
    %388 = vmatprep.subr.mxu0 0.0
    %389 = vmatpush2.xpose.msra.mxu0 0.0
    %390 = vmatprep.subr.mxu0 0.0
    %391 = vmatpush2.xpose.msra.mxu0 0.0
    %392 = vmatprep.subr.mxu0 0.0
    %393 = vmatpush2.xpose.msra.mxu0 0.0
    %394 = vmatprep.subr.mxu0 0.0
    %395 = vmatpush2.xpose.msra.mxu0 0.0
    %396 = vmatprep.subr.mxu0 0.0
    %397 = vmatpush2.xpose.msra.mxu0 0.0
    %398 = vmatprep.mubr.f32.mxu0 1.0
    %399 = vmatmul.mubr.f32.gmra.mxu0 1.0
    %v400 = vpop.f32.mrf.mxu0
    %v401 = vadd.f32 %v325, %v400
    %v402 = vpop.f32.mrf.mxu0
    %403 = vdwg.mxu0
    %404 = vmatprep.subr.mxu0 0.0
    %405 = vmatpush1.xpose.msra.mxu0 0.0
    %406 = vmatprep.subr.mxu0 0.0
    %407 = vmatpush1.xpose.msra.mxu0 0.0
    %408 = vmatprep.subr.mxu0 0.0
    %409 = vmatpush1.xpose.msra.mxu0 0.0
    %410 = vmatprep.subr.mxu0 0.0
    %411 = vmatpush1.xpose.msra.mxu0 0.0
    %412 = vmatprep.subr.mxu0 0.0
    %413 = vmatpush1.xpose.msra.mxu0 0.0
    %414 = vmatprep.subr.mxu0 0.0
    %415 = vmatpush1.xpose.msra.mxu0 0.0
    %416 = vmatprep.subr.mxu0 0.0
    %417 = vmatpush1.xpose.msra.mxu0 0.0
    %418 = vmatprep.subr.mxu0 0.0
    %419 = vmatpush1.xpose.msra.mxu0 0.0
    %420 = vmatprep.subr.mxu0 0.0
    %421 = vmatpush1.xpose.msra.mxu0 0.0
    %422 = vmatprep.subr.mxu0 0.0
    %423 = vmatpush1.xpose.msra.mxu0 0.0
    %424 = vmatprep.subr.mxu0 0.0
    %425 = vmatpush1.xpose.msra.mxu0 0.0
    %426 = vmatprep.subr.mxu0 0.0
    %427 = vmatpush1.xpose.msra.mxu0 0.0
    %428 = vmatprep.subr.mxu0 0.0
    %429 = vmatpush1.xpose.msra.mxu0 0.0
    %430 = vmatprep.subr.mxu0 0.0
    %431 = vmatpush1.xpose.msra.mxu0 0.0
    %432 = vmatprep.subr.mxu0 0.0
    %433 = vmatpush1.xpose.msra.mxu0 0.0
    %v434 = vand.u32 %v28, 4294901760
    %435 = vmatprep.subr.mxu0 %v434
    %v436 = vand.u32 %v27, 4294901760
    %437 = vmatpush1.xpose.msra.mxu0 %v436
    %438 = vmatprep.subr.mxu0 0.0
    %439 = vmatpush2.xpose.msra.mxu0 0.0
    %440 = vmatprep.subr.mxu0 0.0
    %441 = vmatpush2.xpose.msra.mxu0 0.0
    %442 = vmatprep.subr.mxu0 0.0
    %443 = vmatpush2.xpose.msra.mxu0 0.0
    %444 = vmatprep.subr.mxu0 0.0
    %445 = vmatpush2.xpose.msra.mxu0 0.0
    %446 = vmatprep.subr.mxu0 0.0
    %447 = vmatpush2.xpose.msra.mxu0 0.0
    %448 = vmatprep.subr.mxu0 0.0
    %449 = vmatpush2.xpose.msra.mxu0 0.0
    %450 = vmatprep.subr.mxu0 0.0
    %451 = vmatpush2.xpose.msra.mxu0 0.0
    %452 = vmatprep.subr.mxu0 0.0
    %453 = vmatpush2.xpose.msra.mxu0 0.0
    %454 = vmatprep.subr.mxu0 0.0
    %455 = vmatpush2.xpose.msra.mxu0 0.0
    %456 = vmatprep.subr.mxu0 0.0
    %457 = vmatpush2.xpose.msra.mxu0 0.0
    %458 = vmatprep.subr.mxu0 0.0
    %459 = vmatpush2.xpose.msra.mxu0 0.0
    %460 = vmatprep.subr.mxu0 0.0
    %461 = vmatpush2.xpose.msra.mxu0 0.0
    %462 = vmatprep.subr.mxu0 0.0
    %463 = vmatpush2.xpose.msra.mxu0 0.0
    %464 = vmatprep.subr.mxu0 0.0
    %465 = vmatpush2.xpose.msra.mxu0 0.0
    %466 = vmatprep.subr.mxu0 0.0
    %467 = vmatpush2.xpose.msra.mxu0 0.0
    %468 = vmatprep.subr.mxu0 0.0
    %469 = vmatpush2.xpose.msra.mxu0 0.0
    %470 = vmatprep.mubr.f32.mxu0 1.0
    %471 = vmatmul.mubr.f32.gmra.mxu0 1.0
    %v472 = vpop.f32.mrf.mxu0
    %v473 = vadd.f32 %v401, %v472
    %v474 = vpop.f32.mrf.mxu0
    %475 = vdwg.mxu0
    %v476 = vadd.f32 %v29, %v473
    %vm477 = vcmask 57344
    %478 = vst.msk [vmem:[#allocation2] sm:$0x1] %vm477, %v476
    // Predicated region
    $region14: #{tpu_custom_call.1} parent=1 // pred_check
      %p479 = pneg %p21
    $region15: #{tpu_custom_call.1} parent=1 // pred_check_branch
      %481 = sbr.rel (%p479) target = $region17
    $region16: #{tpu_custom_call.1} parent=1 // pred_region
      %v482 = vld [vmem:[#allocation2] sm:$0x1]
      %v483 = vmul.f32 %v482, 0.00390625
      %484 = vst.msk [vmem:[#allocation6] sm:$0x1] %vm477, %v483
    $region17: #{tpu_custom_call.1} parent=1 // pred_fallthru
      _
    // Predicated region
    $region18: #{tpu_custom_call.1} parent=1 // pred_check
      _
    $region19: #{tpu_custom_call.1} parent=1 // pred_check_branch
      %486 = sbr.rel (0) target = $region21
    $region20: #{tpu_custom_call.1} parent=1 // pred_region
      %s488 = ssub.s32 16, 16
      %489 = vsyncadd [#allocation5], %s488
      %s491 = sshll.u32 [#allocation6], 4
      %s492 = int_to_ptr.vmem [resolvable:$true] %s491
      %494 = dma.vmem_to_hbm [thread:$0]  %s492, 16, %s1, [#allocation5]
    $region21: #{tpu_custom_call.1} parent=1 // pred_fallthru
      _
    // Predicated region
    $region22: #{tpu_custom_call.1} parent=1 // pred_check
      _
    $region23: #{tpu_custom_call.1} parent=1 // pred_check_branch
      %496 = sbr.rel (0) target = $region25
    $region24: #{tpu_custom_call.1} parent=1 // pred_region
      %497 = dma.done [#allocation5], 16
    $region25: #{tpu_custom_call.1} parent=1 // pred_fallthru
      _
    %498 = vsyncpa [#allocation4], 1
    %499 = vsyncpa [#allocation5], 1

</llo_original>
